<compile_context>
chip_gen: v7x
topology: tpu7x:2x2x1
jax: 0.10.0
libtpu: 0.0.40
codegen_flags: <defaults>
</compile_context>

<pallas_src>
import functools

import jax
import jax.numpy as jnp
from jax import lax
from jax.experimental import pallas as pl
from jax.experimental.pallas import tpu as pltpu


def _conv3x3_kernel(w_ref, b_ref, xcol_ref, o_ref, *, neg_slope):
    """One (batch, cout-tile, spatial-tile) grid step.

    w_ref:    (Cout_t, 27*Cin)  bf16   folded conv taps
    b_ref:    (Cout_t, 1)       f32    bias
    xcol_ref: (1, 27*Cin, T)    bf16   im2col columns for this spatial tile
    o_ref:    (1, Cout_t, T)    f32/bf16
    """
    # Single MXU matmul, f32 accumulation.  (Cout_t, K) @ (K, T) -> (Cout_t, T)
    acc = jnp.dot(w_ref[...], xcol_ref[0],
                  preferred_element_type=jnp.float32)
    y = acc + b_ref[...]                       # (Cout_t, 1) broadcasts over lanes
    y = jnp.where(y >= 0, y, neg_slope * y)    # LeakyReLU (neg_slope=0 -> ReLU)
    o_ref[0] = y.astype(o_ref.dtype)           # lane-dense, unmasked store


def _round_up(x, m):
    return (x + m - 1) // m * m


def _vmem_budget_bytes():
    """Per-generation scoped-VMEM limit with headroom under the physical cap."""
    cap = 64 * 1024 * 1024                     # conservative fallback (v7x-sized)
    try:
        info = pltpu.get_tpu_info()
        cap = int(getattr(info, "vmem_capacity_bytes", cap))
    except Exception:
        pass
    # 3/4 of physical, capped at 100 MiB (v5e/v6e: ~96 MiB, v7x: 48 MiB).
    return min(cap * 3 // 4, 100 * 1024 * 1024)


def _pick_spatial_tile(dhw, per_lane_bytes, lane_budget_bytes):
    """Largest lane tile (multiple of 128) fitting VMEM; >=2 grid steps if possible."""
    t = max(128, (lane_budget_bytes // max(per_lane_bytes, 1)) // 128 * 128)
    dhw128 = _round_up(dhw, 128)
    t = min(t, dhw128)
    if dhw128 >= 256:
        # Keep at least two spatial steps: pipeline depth + v7x 2-core split at N=1.
        t = min(t, max(128, (dhw128 // 2) // 128 * 128))
    return t


def conv_element(x_ncdhw, w, b, *, stride=1, leaky_p=0.2, use_leaky=True,
                 out_dtype=jnp.float32):
    """Forward of ConvElement.  x_ncdhw: (N, Cin, D, H, W) float32."""
    N, cin, D, H, W = x_ncdhw.shape
    cout = w.shape[0]
    s = int(stride)
    # Output spatial size for kernel=3, padding=1.
    Do = (D - 1) // s + 1
    Ho = (H - 1) // s + 1
    Wo = (W - 1) // s + 1
    DHW = Do * Ho * Wo
    K = 27 * cin

    # --- glue (plain JAX): im2col in bf16, channels-first, tap-major --------
    # Casting to bf16 BEFORE pad/slice/stack halves the slab's HBM bytes; it is
    # numerically identical to building in f32 and casting afterwards.
    xb = x_ncdhw.astype(jnp.bfloat16)
    xp = jnp.pad(xb, ((0, 0), (0, 0), (1, 1), (1, 1), (1, 1)))
    cols = []
    for kd in range(3):
        for kh in range(3):
            for kw in range(3):
                cols.append(lax.slice(
                    xp,
                    (0, 0, kd, kh, kw),
                    (N, cin, kd + (Do - 1) * s + 1,
                     kh + (Ho - 1) * s + 1, kw + (Wo - 1) * s + 1),
                    (1, 1, s, s, s)))
    # cols[tap][n, c, d, h, w] = xp[n, c, d*s+kd, h*s+kh, w*s+kw]
    xcol = jnp.stack(cols, axis=1).reshape(N, K, DHW)          # (N, 27*Cin, DHW)

    # torch Conv3d weight (Cout, Cin, 3, 3, 3) -> (Cout, 27*Cin) in the same
    # (kd, kh, kw, cin) tap-major ordering as xcol.
    wk = jnp.transpose(w, (0, 2, 3, 4, 1)).reshape(cout, K).astype(jnp.bfloat16)
    bk = b.reshape(cout, 1).astype(jnp.float32)

    # --- Cout tiling ---------------------------------------------------------
    if cout <= 256:
        cout_t = cout
    elif cout % 256 == 0:
        cout_t = 256
    elif cout % 128 == 0:
        cout_t = 128
    else:
        cout_t = cout        # TODO(synk): pad Cout for odd large channel counts
    n_c = cout // cout_t

    # --- VMEM-aware lane-tile selection --------------------------------------
    out_itemsize = jnp.dtype(out_dtype).itemsize
    vmem_limit = _vmem_budget_bytes()
    # Double-buffered weight/bias blocks + margin for internal scratch.
    fixed_bytes = 2 * cout_t * K * 2 + 2 * cout_t * 4 + (2 << 20)
    # Double-buffered xcol + output blocks, per lane of T.
    per_lane = 2 * K * 2 + 2 * cout_t * out_itemsize
    T = _pick_spatial_tile(DHW, per_lane, vmem_limit - fixed_bytes)

    # Zero-pad the flattened voxel axis to a multiple of T (itself a multiple
    # of 128): unmasked 128-wide stores, clean grid split.
    DHW_pad = _round_up(DHW, T)
    if DHW_pad != DHW:
        xcol = jnp.pad(xcol, ((0, 0), (0, 0), (0, DHW_pad - DHW)))
    n_s = DHW_pad // T

    neg_slope = float(leaky_p) if use_leaky else 0.0
    kernel = functools.partial(_conv3x3_kernel, neg_slope=neg_slope)

    out_flat = pl.pallas_call(
        kernel,
        out_shape=jax.ShapeDtypeStruct((N, cout, DHW_pad), out_dtype),
        grid_spec=pltpu.PrefetchScalarGridSpec(
            num_scalar_prefetch=0,
            # Spatial tiles innermost so the (grid-invariant) weight block is
            # not re-fetched across consecutive steps.
            grid=(N, n_c, n_s),
            in_specs=[
                pl.BlockSpec((cout_t, K), lambda n, c, t: (c, 0)),
                pl.BlockSpec((cout_t, 1), lambda n, c, t: (c, 0)),
                pl.BlockSpec((1, K, T), lambda n, c, t: (n, 0, t)),
            ],
            out_specs=pl.BlockSpec((1, cout_t, T), lambda n, c, t: (n, c, t)),
        ),
        compiler_params=pltpu.CompilerParams(
            dimension_semantics=("parallel", "parallel", "parallel"),
            vmem_limit_bytes=int(vmem_limit)),
    )(wk, bk, xcol)

    if DHW_pad != DHW:
        out_flat = out_flat[:, :, :DHW]
    # (N, Cout, DHW) -> (N, Cout, Do, Ho, Wo): same row-major layout, free.
    return out_flat.reshape(N, cout, Do, Ho, Wo)


def _reference(x, w, b, *, stride=1, leaky_p=0.2, use_leaky=True):
    """Pure-JAX reference matching the PyTorch ConvElement forward."""
    dn = lax.conv_dimension_numbers(x.shape, w.shape,
                                    ("NCDHW", "OIDHW", "NCDHW"))
    y = lax.conv_general_dilated(x, w, (stride,) * 3,
                                 ((1, 1), (1, 1), (1, 1)),
                                 dimension_numbers=dn)
    y = y + b[None, :, None, None, None]
    slope = leaky_p if use_leaky else 0.0
    return jnp.where(y >= 0, y, slope * y)


if __name__ == "__main__":
    # Small shapes consistent with the module: N=2, Cin=4, Cout=8, D=H=W=8.
    N, CIN, COUT, D, H, W = 2, 4, 8, 8, 8, 8

    key = jax.random.PRNGKey(0)
    kx, kw_, kb = jax.random.split(key, 3)
    x = jax.random.normal(kx, (N, CIN, D, H, W), jnp.float32)
    w = 0.1 * jax.random.normal(kw_, (COUT, CIN, 3, 3, 3), jnp.float32)
    b = 0.1 * jax.random.normal(kb, (COUT,), jnp.float32)

    # LeakyReLU, stride 1 (DHW=512 -> two lane-dense spatial tiles).
    out = jax.block_until_ready(
        conv_element(x, w, b, stride=1, leaky_p=0.2, use_leaky=True))
    ref = jax.block_until_ready(
        _reference(x, w, b, stride=1, leaky_p=0.2, use_leaky=True))
    assert out.shape == (N, COUT, D, H, W), out.shape
    err = float(jnp.max(jnp.abs(out - ref)))
    # Tolerance loosened because matmul operands are bf16 (f32 accumulation).
    assert jnp.allclose(out, ref, atol=3e-2, rtol=3e-2), err

    # ReLU, stride 2 (DHW=64 -> exercises the lane-padding path).
    out2 = jax.block_until_ready(
        conv_element(x, w, b, stride=2, use_leaky=False))
    ref2 = jax.block_until_ready(
        _reference(x, w, b, stride=2, use_leaky=False))
    assert out2.shape == (N, COUT, 4, 4, 4), out2.shape
    err2 = float(jnp.max(jnp.abs(out2 - ref2)))
    assert jnp.allclose(out2, ref2, atol=3e-2, rtol=3e-2), err2

    print("KERNEL_OK")
</pallas_src>

<mosaic_0001>
module attributes {stable_mosaic.version = 11 : i64} {
  func.func @_conv3x3_kernel(%arg0: i32, %arg1: i32, %arg2: i32, %arg3: memref<8x108xbf16, #tpu.memory_space<vmem>>, %arg4: memref<8x1xf32, #tpu.memory_space<vmem>>, %arg5: memref<1x108x256xbf16, #tpu.memory_space<vmem>>, %arg6: memref<1x8x256xf32, #tpu.memory_space<vmem>>) attributes {dimension_semantics = [#tpu.dimension_semantics<parallel>, #tpu.dimension_semantics<parallel>, #tpu.dimension_semantics<parallel>], iteration_bounds = array<i64: 2, 1, 2>, scalar_prefetch = 0 : i64, scratch_operands = 0 : i64, tpu.core_type = #tpu.core_type<tc>, window_params = [{transform_indices = @transform_0, window_bounds = array<i64: 8, 108>}, {transform_indices = @transform_1, window_bounds = array<i64: 8, 1>}, {transform_indices = @transform_2, window_bounds = array<i64: 1, 108, 256>}, {transform_indices = @transform_3, window_bounds = array<i64: 1, 8, 256>}]} {
    %c0 = arith.constant 0 : index
    %c0_0 = arith.constant 0 : index
    %0 = vector.load %arg3[%c0, %c0_0] : memref<8x108xbf16, #tpu.memory_space<vmem>>, vector<8x108xbf16>
    %c0_1 = arith.constant 0 : index
    %c0_2 = arith.constant 0 : index
    %c0_3 = arith.constant 0 : index
    %1 = vector.load %arg5[%c0_1, %c0_2, %c0_3] : memref<1x108x256xbf16, #tpu.memory_space<vmem>>, vector<1x108x256xbf16>
    %2 = vector.shape_cast %1 : vector<1x108x256xbf16> to vector<108x256xbf16>
    %cst = arith.constant dense<0.000000e+00> : vector<8x256xf32>
    %3 = tpu.matmul %0, %2, %cst {dimension_numbers = #tpu.dot_dimension_numbers<[1], [0], [0], [1], [0, 0, 1, 1], [], []>} : vector<8x108xbf16>, vector<108x256xbf16>, vector<8x256xf32> -> vector<8x256xf32>
    %c0_4 = arith.constant 0 : index
    %c0_5 = arith.constant 0 : index
    %4 = vector.load %arg4[%c0_4, %c0_5] : memref<8x1xf32, #tpu.memory_space<vmem>>, vector<8x1xf32>
    %5 = vector.broadcast %4 : vector<8x1xf32> to vector<8x256xf32>
    %6 = arith.addf %3, %5 : vector<8x256xf32>
    %cst_6 = arith.constant 0.000000e+00 : f32
    %7 = vector.broadcast %cst_6 : f32 to vector<8x256xf32>
    %8 = arith.cmpf oge, %6, %7 : vector<8x256xf32>
    %cst_7 = arith.constant 2.000000e-01 : f32
    %9 = vector.broadcast %cst_7 : f32 to vector<8x256xf32>
    %10 = arith.mulf %9, %6 : vector<8x256xf32>
    %11 = arith.select %8, %6, %10 : vector<8x256xi1>, vector<8x256xf32>
    %c0_8 = arith.constant 0 : index
    %c0_9 = arith.constant 0 : index
    %c0_10 = arith.constant 0 : index
    %12 = vector.load %arg6[%c0_8, %c0_9, %c0_10] : memref<1x8x256xf32, #tpu.memory_space<vmem>>, vector<1x8x256xf32>
    %13 = vector.shape_cast %12 : vector<1x8x256xf32> to vector<8x256xf32>
    %14 = vector.shape_cast %11 : vector<8x256xf32> to vector<1x8x256xf32>
    tpu.vector_store %arg6[%c0_8, %c0_9, %c0_10], %14 {strides = array<i32>} : memref<1x8x256xf32, #tpu.memory_space<vmem>>, vector<1x8x256xf32>,
    return
  }
  func.func @transform_0(%arg0: i32, %arg1: i32, %arg2: i32) -> (i32, i32) {
    %c0_i32 = arith.constant 0 : i32
    %c0_i32_0 = arith.constant 0 : i32
    return %arg1, %c0_i32 : i32, i32
  }
  func.func @transform_1(%arg0: i32, %arg1: i32, %arg2: i32) -> (i32, i32) {
    %c0_i32 = arith.constant 0 : i32
    %c0_i32_0 = arith.constant 0 : i32
    return %arg1, %c0_i32 : i32, i32
  }
  func.func @transform_2(%arg0: i32, %arg1: i32, %arg2: i32) -> (i32, i32, i32) {
    %c0_i32 = arith.constant 0 : i32
    %c0_i32_0 = arith.constant 0 : i32
    return %arg0, %c0_i32, %arg2 : i32, i32, i32
  }
  func.func @transform_3(%arg0: i32, %arg1: i32, %arg2: i32) -> (i32, i32, i32) {
    %c0_i32 = arith.constant 0 : i32
    return %arg0, %arg1, %arg2 : i32, i32, i32
  }
}

</mosaic_0001>

<llo_original>
// kernel: tpu_custom_call.1
$region0: #{tpu_custom_call.1}
  #allocation0 [shape = 'u32[]', space=smem, size = 0x4, offset = 0x4, fixed_abs, tag = 'smem constant byte address 0x4 - core index']
  #allocation1 [shape = 'u32[144,128]{1,0:T(1,128)}', space=vmem, size = 0x12000, scoped, tag = 'internal scratch']
  %s0 = inlined_call_operand.vmem [shape: bf16[8,108], index: 0, kind: input, shape index: {}]
  %s1 = inlined_call_operand.vmem [shape: f32[8,1], index: 1, kind: input, shape index: {}]
  %s2 = inlined_call_operand.vmem [shape: bf16[2,108,512], index: 2, kind: input, shape index: {}]
  %s3 = inlined_call_operand.hbm [shape: f32[2,8,512], index: 3, kind: output, shape index: {}]
  %s4 = sld [smem:[#allocation0]]
  $region83: #{tpu_custom_call.1} parent=0
    _
  %s6 = ssub.s32 1, %s4
  %s7 = scalar_select 0, %s6, %s4
  $region1: #{tpu_custom_call.1} parent=0
    #allocation2 [shape = 'u8[114688]{0}', space=vmem, size = 0x1c000, scoped, tag = 'input window, operand 2']
    #allocation3 [shape = 'u8[16384]{0}', space=vmem, size = 0x4000, scoped, tag = 'output window, operand 0']
    #allocation4 [shape = 's32[2]{0}', space=sflag, size = 0x8, scoped, tag = 'scoped memory for tpu_custom_call.1']
    %8 = vsyncpa [#allocation4], 0
    %s9 = scalar_lea.sflag [#allocation4], 1
    %10 = vsyncpa %s9, 0
    loop: start=0, step=1, limit=6
    $region2: #{tpu_custom_call.1} parent=1 // loop_pre_header
      _
    $region3: #{tpu_custom_call.1} parent=1 // loop_header
      %s12 = sphi 0, %s16
      %p13 = scmp.ge.s32.totalorder %s12, 6
      %s19 = sphi 0, %s38
      %s20 = sphi 0, %s34
      %s21 = sphi 0, %s30
      %s22 = sphi 0, %s19
      %s23 = sphi 0, %s20
      %s24 = sphi 0, %s21
      %s25 = sphi 0, %s22
      %s26 = sphi 0, %s23
      %s27 = sphi 0, %s24
      %s41 = sphi 0, %s43
      %s44 = sphi 0, %s41
      %s45 = sphi 0, %s44
      %s61 = sphi 0, %s45
      %s67 = sphi 0, %s69
      %s70 = sphi 0, %s67
      %s71 = sphi 0, %s70
      %s87 = sphi 0, %s71
      %s95 = sphi 0, %s97
      %s98 = sphi 0, %s95
      %s99 = sphi 0, %s98
      %s115 = sphi 0, %s99
      %s125 = sphi 0, %s127
      %s128 = sphi 0, %s125
      %s129 = sphi 0, %s128
      %s145 = sphi 0, %s129
    $region4: #{tpu_custom_call.1} parent=1 // loop_header_branch
      %15 = sbr.rel (%p13) target = $region8
    $region5: #{tpu_custom_call.1} parent=1 // loop_body
      %s17 = ssub.s32 %s12, 1
      %s18 = ssub.s32 %s12, 2
      %s28 = sadd.s32 1, %s21
      %p29 = scmp.ge.s32.totalorder %s28, 2
      %s30 = scalar_select %p29, 0, %s28
      %s31 = sadd.s32 1, %s20
      %s32 = scalar_select %p29, %s31, %s20
      %p33 = scmp.ge.s32.totalorder %s32, 1
      %s34 = scalar_select %p33, 0, %s32
      %s35 = sadd.s32 1, %s19
      %s36 = scalar_select %p33, %s35, %s19
      %p37 = scmp.ge.s32.totalorder %s36, 2
      %s38 = scalar_select %p37, 0, %s36
      %s39 = ssub.s32 %s20, %s34
      %p40 = scmp.eq.s32.totalorder %s39, 0
      %s42 = sadd.s32 %s41, 1
      %s43 = scalar_select %p40, %s41, %s42
      %p46 = pneg %p40
      %p47 = scmp.eq.s32.totalorder %s12, 3
      %p48 = por %p46, %p47
      %p49 = scmp.ne.s32.totalorder %s41, %s44
      %p50 = scmp.eq.s32.totalorder %s12, 0
      %p51 = por %p49, %p50
      %p52 = scmp.ne.s32.totalorder %s41, %s44
      %p53 = scmp.eq.s32.totalorder %s17, 3
      %p54 = por %p52, %p53
      %p55 = scmp.ne.s32.totalorder %s44, %s45
      %p56 = scmp.eq.s32.totalorder %s17, 0
      %p57 = por %p55, %p56
      %p58 = scmp.ne.s32.totalorder %s44, %s45
      %p59 = scmp.eq.s32.totalorder %s18, 3
      %p60 = por %p58, %p59
      %p62 = scmp.ne.s32.totalorder %s45, %s61
      %p63 = scmp.eq.s32.totalorder %s18, 0
      %p64 = por %p62, %p63
      %s65 = ssub.s32 %s20, %s34
      %p66 = scmp.eq.s32.totalorder %s65, 0
      %s68 = sadd.s32 %s67, 1
      %s69 = scalar_select %p66, %s67, %s68
      %p72 = pneg %p66
      %p73 = scmp.eq.s32.totalorder %s12, 3
      %p74 = por %p72, %p73
      %p75 = scmp.ne.s32.totalorder %s67, %s70
      %p76 = scmp.eq.s32.totalorder %s12, 0
      %p77 = por %p75, %p76
      %p78 = scmp.ne.s32.totalorder %s67, %s70
      %p79 = scmp.eq.s32.totalorder %s17, 3
      %p80 = por %p78, %p79
      %p81 = scmp.ne.s32.totalorder %s70, %s71
      %p82 = scmp.eq.s32.totalorder %s17, 0
      %p83 = por %p81, %p82
      %p84 = scmp.ne.s32.totalorder %s70, %s71
      %p85 = scmp.eq.s32.totalorder %s18, 3
      %p86 = por %p84, %p85
      %p88 = scmp.ne.s32.totalorder %s71, %s87
      %p89 = scmp.eq.s32.totalorder %s18, 0
      %p90 = por %p88, %p89
      %s91 = ssub.s32 %s19, %s38
      %s92 = ssub.s32 %s21, %s30
      %s93 = sor.u32 %s91, %s92
      %p94 = scmp.eq.s32.totalorder %s93, 0
      %s96 = sadd.s32 %s95, 1
      %s97 = scalar_select %p94, %s95, %s96
      %p100 = pneg %p94
      %p101 = scmp.eq.s32.totalorder %s12, 3
      %p102 = por %p100, %p101
      %p103 = scmp.ne.s32.totalorder %s95, %s98
      %p104 = scmp.eq.s32.totalorder %s12, 0
      %p105 = por %p103, %p104
      %p106 = scmp.ne.s32.totalorder %s95, %s98
      %p107 = scmp.eq.s32.totalorder %s17, 3
      %p108 = por %p106, %p107
      %p109 = scmp.ne.s32.totalorder %s98, %s99
      %p110 = scmp.eq.s32.totalorder %s17, 0
      %p111 = por %p109, %p110
      %p112 = scmp.ne.s32.totalorder %s98, %s99
      %p113 = scmp.eq.s32.totalorder %s18, 3
      %p114 = por %p112, %p113
      %p116 = scmp.ne.s32.totalorder %s99, %s115
      %p117 = scmp.eq.s32.totalorder %s18, 0
      %p118 = por %p116, %p117
      %s119 = ssub.s32 %s19, %s38
      %s120 = ssub.s32 %s20, %s34
      %s121 = sor.u32 %s119, %s120
      %s122 = ssub.s32 %s21, %s30
      %s123 = sor.u32 %s121, %s122
      %p124 = scmp.eq.s32.totalorder %s123, 0
      %s126 = sadd.s32 %s125, 1
      %s127 = scalar_select %p124, %s125, %s126
      %p130 = pneg %p124
      %p131 = scmp.eq.s32.totalorder %s12, 3
      %p132 = por %p130, %p131
      %p133 = scmp.ne.s32.totalorder %s125, %s128
      %p134 = scmp.eq.s32.totalorder %s12, 0
      %p135 = por %p133, %p134
      %p136 = scmp.ne.s32.totalorder %s125, %s128
      %p137 = scmp.eq.s32.totalorder %s17, 3
      %p138 = por %p136, %p137
      %p139 = scmp.ne.s32.totalorder %s128, %s129
      %p140 = scmp.eq.s32.totalorder %s17, 0
      %p141 = por %p139, %p140
      %p142 = scmp.ne.s32.totalorder %s128, %s129
      %p143 = scmp.eq.s32.totalorder %s18, 3
      %p144 = por %p142, %p143
      %p146 = scmp.ne.s32.totalorder %s129, %s145
      %p147 = scmp.eq.s32.totalorder %s18, 0
      %p148 = por %p146, %p147
      %p149 = scmp.le.s32.totalorder 1, %s12
      %p150 = scmp.lt.s32.totalorder %s12, 5
      %p151 = pnand %p149, %p150
      %p152 = pneg %p151
      // Predicated region
      $region9: #{tpu_custom_call.1} parent=5 // pred_check
        _
      $region10: #{tpu_custom_call.1} parent=5 // pred_check_branch
        %154 = sbr.rel (%p151) target = $region12
      $region11: #{tpu_custom_call.1} parent=5 // pred_region
        %s155 = ssub.s32 %s12, 1
        // Predicated region
        $region13: #{tpu_custom_call.1} parent=11 // pred_check
          %p156 = pneg %p57
        $region14: #{tpu_custom_call.1} parent=11 // pred_check_branch
          %158 = sbr.rel (%p156) target = $region16
        $region15: #{tpu_custom_call.1} parent=11 // pred_region
          %p159 = scmp.lt.s32.totalorder %s23, 0
          %s160 = scalar_select %p159, %s23, 0
          %s161 = smul.addr %s160, 4
          %s162 = scalar_lea.vmem %s0, %s161
        $region16: #{tpu_custom_call.1} parent=11 // pred_fallthru
          _
        // Predicated region
        $region17: #{tpu_custom_call.1} parent=11 // pred_check
          %p163 = pneg %p83
        $region18: #{tpu_custom_call.1} parent=11 // pred_check_branch
          %165 = sbr.rel (%p163) target = $region20
        $region19: #{tpu_custom_call.1} parent=11 // pred_region
          %p166 = scmp.lt.s32.totalorder %s23, 0
          %s167 = scalar_select %p166, %s23, 0
          %s168 = smul.addr %s167, 8
          %s169 = scalar_lea.vmem %s1, %s168
        $region20: #{tpu_custom_call.1} parent=11 // pred_fallthru
          _
      $region12: #{tpu_custom_call.1} parent=5 // pred_fallthru
        _
      %p170 = scmp.lt.s32.totalorder %s12, 4
      // Predicated region
      $region21: #{tpu_custom_call.1} parent=5 // pred_check
        %p171 = pneg %p170
      $region22: #{tpu_custom_call.1} parent=5 // pred_check_branch
        %173 = sbr.rel (%p171) target = $region24
      $region23: #{tpu_custom_call.1} parent=5 // pred_region
        // Predicated region
        $region25: #{tpu_custom_call.1} parent=23 // pred_check
          %p174 = pneg %p105
        $region26: #{tpu_custom_call.1} parent=23 // pred_check_branch
          %176 = sbr.rel (%p174) target = $region28
        $region27: #{tpu_custom_call.1} parent=23 // pred_region
          %s177 = sand.u32 %s95, 1
          %s178 = sand.u32 %s95, 1
          %s179 = smul.addr %s178, 112
          %s180 = scalar_lea.vmem [#allocation2], %s179
          %s181 = smul.u32 2, %s21
          %s182 = smul.addr %s19, 56
          %s183 = sadd.s32 %s181, %s182
          %s184 = smul.addr %s183, 4
          %s185 = scalar_lea.vmem %s2, %s184
          // Predicated region
          $region29: #{tpu_custom_call.1} parent=27 // pred_check
            _
          $region30: #{tpu_custom_call.1} parent=27 // pred_check_branch
            %187 = sbr.rel (0) target = $region32
          $region31: #{tpu_custom_call.1} parent=27 // pred_region
            // Predicated region
            $region33: #{tpu_custom_call.1} parent=31 // pred_check
              _
            $region34: #{tpu_custom_call.1} parent=31 // pred_check_branch
              %189 = sbr.rel (0) target = $region36
            $region35: #{tpu_custom_call.1} parent=31 // pred_region
              // Predicated region
              $region48: #{tpu_custom_call.1} parent=35 // pred_check
                _
              $region49: #{tpu_custom_call.1} parent=35 // pred_check_branch
                %230 = sbr.rel (0) target = $region51
              $region50: #{tpu_custom_call.1} parent=35 // pred_region
                loop: start=0, step=1, limit=1
                $region52: #{tpu_custom_call.1} parent=50 // loop_pre_header
                  _
                $region53: #{tpu_custom_call.1} parent=50 // loop_header
                  %s232 = sphi 0, %s236
                  %p233 = scmp.ge.s32.totalorder %s232, 1
                  %s237 = sphi %s185, %s185
                  %s238 = sphi %s180, %s180
                $region54: #{tpu_custom_call.1} parent=50 // loop_header_branch
                  %235 = sbr.rel (%p233) target = $region58
                $region55: #{tpu_custom_call.1} parent=50 // loop_body
                  %v239 = vld [vmem:[%s237] sm:$0xff]
                  %240 = vst [vmem:[%s238] sm:$0xff] %v239
                  %v241 = vld [vmem:[%s237 + $0x10] sm:$0xff]
                  %242 = vst [vmem:[%s238 + $0x8] sm:$0xff] %v241
                  %v243 = vld [vmem:[%s237 + $0x20] sm:$0xff]
                  %244 = vst [vmem:[%s238 + $0x10] sm:$0xff] %v243
                  %v245 = vld [vmem:[%s237 + $0x30] sm:$0xff]
                  %246 = vst [vmem:[%s238 + $0x18] sm:$0xff] %v245
                  %v247 = vld [vmem:[%s237 + $0x40] sm:$0xff]
                  %248 = vst [vmem:[%s238 + $0x20] sm:$0xff] %v247
                  %v249 = vld [vmem:[%s237 + $0x50] sm:$0xff]
                  %250 = vst [vmem:[%s238 + $0x28] sm:$0xff] %v249
                  %v251 = vld [vmem:[%s237 + $0x60] sm:$0xff]
                  %252 = vst [vmem:[%s238 + $0x30] sm:$0xff] %v251
                  %v253 = vld [vmem:[%s237 + $0x70] sm:$0xff]
                  %254 = vst [vmem:[%s238 + $0x38] sm:$0xff] %v253
                  %v255 = vld [vmem:[%s237 + $0x80] sm:$0xff]
                  %256 = vst [vmem:[%s238 + $0x40] sm:$0xff] %v255
                  %v257 = vld [vmem:[%s237 + $0x90] sm:$0xff]
                  %258 = vst [vmem:[%s238 + $0x48] sm:$0xff] %v257
                  %v259 = vld [vmem:[%s237 + $0xa0] sm:$0xff]
                  %260 = vst [vmem:[%s238 + $0x50] sm:$0xff] %v259
                  %v261 = vld [vmem:[%s237 + $0xb0] sm:$0xff]
                  %262 = vst [vmem:[%s238 + $0x58] sm:$0xff] %v261
                  %v263 = vld [vmem:[%s237 + $0xc0] sm:$0xff]
                  %264 = vst [vmem:[%s238 + $0x60] sm:$0xff] %v263
                  %v265 = vld [vmem:[%s237 + $0xd0] sm:$0xff]
                  %266 = vst [vmem:[%s238 + $0x68] sm:$0xff] %v265
                $region56: #{tpu_custom_call.1} parent=50 // loop_footer
                  %s236 = sadd.s32 1, %s232
                $region57: #{tpu_custom_call.1} parent=50 // loop_footer_branch
                  %231 = sbr.rel target = $region53
                $region58: #{tpu_custom_call.1} parent=50 // loop_exit
                  _
              $region51: #{tpu_custom_call.1} parent=35 // pred_fallthru
                _
              // Predicated region
              $region59: #{tpu_custom_call.1} parent=35 // pred_check
                _
              $region60: #{tpu_custom_call.1} parent=35 // pred_check_branch
                %268 = sbr.rel target = $region62
              $region61: #{tpu_custom_call.1} parent=35 // pred_region
                _
              $region62: #{tpu_custom_call.1} parent=35 // pred_fallthru
                _
            $region36: #{tpu_custom_call.1} parent=31 // pred_fallthru
              _
            // Predicated region
            $region37: #{tpu_custom_call.1} parent=31 // pred_check
              _
            $region38: #{tpu_custom_call.1} parent=31 // pred_check_branch
              %191 = sbr.rel target = $region40
            $region39: #{tpu_custom_call.1} parent=31 // pred_region
              loop: start=0, step=1, limit=1
              $region41: #{tpu_custom_call.1} parent=39 // loop_pre_header
                _
              $region42: #{tpu_custom_call.1} parent=39 // loop_header
                %s194 = sphi 0, %s198
                %p195 = scmp.ge.s32.totalorder %s194, 1
                %s199 = sphi %s185, %s185
                %s200 = sphi %s180, %s180
              $region43: #{tpu_custom_call.1} parent=39 // loop_header_branch
                %197 = sbr.rel (%p195) target = $region47
              $region44: #{tpu_custom_call.1} parent=39 // loop_body
                %v201 = vld [vmem:[%s199] sm:$0xff]
                %202 = vst [vmem:[%s200] sm:$0xff] %v201
                %v203 = vld [vmem:[%s199 + $0x10] sm:$0xff]
                %204 = vst [vmem:[%s200 + $0x8] sm:$0xff] %v203
                %v205 = vld [vmem:[%s199 + $0x20] sm:$0xff]
                %206 = vst [vmem:[%s200 + $0x10] sm:$0xff] %v205
                %v207 = vld [vmem:[%s199 + $0x30] sm:$0xff]
                %208 = vst [vmem:[%s200 + $0x18] sm:$0xff] %v207
                %v209 = vld [vmem:[%s199 + $0x40] sm:$0xff]
                %210 = vst [vmem:[%s200 + $0x20] sm:$0xff] %v209
                %v211 = vld [vmem:[%s199 + $0x50] sm:$0xff]
                %212 = vst [vmem:[%s200 + $0x28] sm:$0xff] %v211
                %v213 = vld [vmem:[%s199 + $0x60] sm:$0xff]
                %214 = vst [vmem:[%s200 + $0x30] sm:$0xff] %v213
                %v215 = vld [vmem:[%s199 + $0x70] sm:$0xff]
                %216 = vst [vmem:[%s200 + $0x38] sm:$0xff] %v215
                %v217 = vld [vmem:[%s199 + $0x80] sm:$0xff]
                %218 = vst [vmem:[%s200 + $0x40] sm:$0xff] %v217
                %v219 = vld [vmem:[%s199 + $0x90] sm:$0xff]
                %220 = vst [vmem:[%s200 + $0x48] sm:$0xff] %v219
                %v221 = vld [vmem:[%s199 + $0xa0] sm:$0xff]
                %222 = vst [vmem:[%s200 + $0x50] sm:$0xff] %v221
                %v223 = vld [vmem:[%s199 + $0xb0] sm:$0xff]
                %224 = vst [vmem:[%s200 + $0x58] sm:$0xff] %v223
                %v225 = vld [vmem:[%s199 + $0xc0] sm:$0xff]
                %226 = vst [vmem:[%s200 + $0x60] sm:$0xff] %v225
                %v227 = vld [vmem:[%s199 + $0xd0] sm:$0xff]
                %228 = vst [vmem:[%s200 + $0x68] sm:$0xff] %v227
              $region45: #{tpu_custom_call.1} parent=39 // loop_footer
                %s198 = sadd.s32 1, %s194
              $region46: #{tpu_custom_call.1} parent=39 // loop_footer_branch
                %193 = sbr.rel target = $region42
              $region47: #{tpu_custom_call.1} parent=39 // loop_exit
                _
            $region40: #{tpu_custom_call.1} parent=31 // pred_fallthru
              _
          $region32: #{tpu_custom_call.1} parent=27 // pred_fallthru
            _
          %269 = vnop
        $region28: #{tpu_custom_call.1} parent=23 // pred_fallthru
          _
      $region24: #{tpu_custom_call.1} parent=5 // pred_fallthru
        _
      %p270 = scmp.le.s32.totalorder 1, %s12
      %p271 = scmp.lt.s32.totalorder %s12, 5
      %p272 = pnand %p270, %p271
      %p273 = pneg %p272
      // Predicated region
      $region63: #{tpu_custom_call.1} parent=5 // pred_check
        _
      $region64: #{tpu_custom_call.1} parent=5 // pred_check_branch
        %275 = sbr.rel (%p272) target = $region66
      $region65: #{tpu_custom_call.1} parent=5 // pred_region
        %s276 = ssub.s32 %s12, 1
        %s277 = sand.u32 %s98, 1
        %s278 = sand.u32 %s98, 1
        %s279 = smul.addr %s278, 112
        %s280 = scalar_lea.vmem [#allocation2], %s279
        // Predicated region
        $region67: #{tpu_custom_call.1} parent=65 // pred_check
          %p281 = pneg %p111
        $region68: #{tpu_custom_call.1} parent=65 // pred_check_branch
          %283 = sbr.rel (%p281) target = $region70
        $region69: #{tpu_custom_call.1} parent=65 // pred_region
          _
        $region70: #{tpu_custom_call.1} parent=65 // pred_fallthru
          _
        %p284 = scmp.lt.s32.totalorder %s23, 0
        %s285 = scalar_select %p284, %s23, 0
        %s286 = smul.addr %s285, 4
        %s287 = scalar_lea.vmem %s0, %s286
        %p288 = pneg %p57
        %p289 = pneg %p54
        %p290 = scmp.lt.s32.totalorder %s23, 0
        %s291 = scalar_select %p290, %s23, 0
        %s292 = smul.addr %s291, 8
        %s293 = scalar_lea.vmem %s1, %s292
        %p294 = pneg %p83
        %p295 = pneg %p80
        %s296 = sand.u32 %s98, 1
        %s297 = sand.u32 %s98, 1
        %s298 = smul.addr %s297, 112
        %s299 = scalar_lea.vmem [#allocation2], %s298
        %p300 = pneg %p111
        %p301 = pneg %p108
        %p302 = pneg %p141
        %p303 = pneg %p138
        %s304 = sand.u32 %s128, 1
        %s305 = scalar_lea.sflag [#allocation4], %s304
        %s306 = sand.u32 %s128, 1
        %s307 = smul.addr %s306, 16
        %s308 = scalar_lea.vmem [#allocation3], %s307
        %p309 = scmp.lt.s32.totalorder %s23, 0
        %s310 = scalar_select %p309, %s23, 0
        %s311 = smul.addr %s310, 4
        %s312 = scalar_lea.vmem %s0, %s311
        %p313 = scmp.lt.s32.totalorder %s23, 0
        %s314 = scalar_select %p313, %s23, 0
        %s315 = smul.addr %s314, 8
        %s316 = scalar_lea.vmem %s1, %s315
        %s317 = smul.u32 2, %s24
        %s318 = smul.u32 2, %s24
        %v320 = vld [vmem:[%s312] sm:$0xf]
        %v321 = vld [vmem:[%s280] sm:$0xff]
        %v322 = vld [vmem:[%s280 + $0x8] sm:$0xff]
        %v323 = vld [vmem:[%s280 + $0x10] sm:$0xff]
        %v324 = vld [vmem:[%s280 + $0x18] sm:$0xff]
        %v325 = vld [vmem:[%s280 + $0x20] sm:$0xff]
        %v326 = vld [vmem:[%s280 + $0x28] sm:$0xff]
        %v327 = vld [vmem:[%s280 + $0x30] sm:$0xff]
        %v328 = vld [vmem:[%s280 + $0x38] sm:$0xff]
        %v329 = vld [vmem:[%s280 + $0x40] sm:$0xff]
        %v330 = vld [vmem:[%s280 + $0x48] sm:$0xff]
        %v331 = vld [vmem:[%s280 + $0x50] sm:$0xff]
        %v332 = vld [vmem:[%s280 + $0x58] sm:$0xff]
        %v333 = vld [vmem:[%s280 + $0x60] sm:$0xff]
        %v334 = vld [vmem:[%s280 + $0x68] sm:$0x33]
        %v335 = vld [vmem:[%s316] sm:$0xff]
        %337 = vset.pattern.permute.xlu0 0
        %338 = vperm.xlu0 %337, %v335
        %v339 = vpop.permute.xlu0 %338
        %v355 = vunpack.c.l.b16 %v321
        %v356 = vunpack.c.h.b16 %v321
        %v357 = vunpack.c.l.b16 %v322
        %v358 = vunpack.c.h.b16 %v322
        %v359 = vunpack.c.l.b16 %v323
        %v360 = vunpack.c.h.b16 %v323
        %v361 = vunpack.c.l.b16 %v324
        %v362 = vunpack.c.h.b16 %v324
        %v363 = vunpack.c.l.b16 %v325
        %v364 = vunpack.c.h.b16 %v325
        %v365 = vunpack.c.l.b16 %v326
        %v366 = vunpack.c.h.b16 %v326
        %v367 = vunpack.c.l.b16 %v327
        %v368 = vunpack.c.h.b16 %v327
        %v369 = vunpack.c.l.b16 %v328
        %v370 = vunpack.c.h.b16 %v328
        %v371 = vunpack.c.l.b16 %v329
        %v372 = vunpack.c.h.b16 %v329
        %v373 = vunpack.c.l.b16 %v330
        %v374 = vunpack.c.h.b16 %v330
        %v375 = vunpack.c.l.b16 %v331
        %v376 = vunpack.c.h.b16 %v331
        %v377 = vunpack.c.l.b16 %v332
        %v378 = vunpack.c.h.b16 %v332
        %v379 = vunpack.c.l.b16 %v333
        %v380 = vunpack.c.h.b16 %v333
        %v381 = vunpack.c.l.b16 %v334
        %v382 = vunpack.c.h.b16 %v334
        %v383 = vpack.c.b16 %v357, %v355
        %v384 = vpack.c.b16 %v358, %v356
        %v385 = vpack.c.b16 %v361, %v359
        %v386 = vpack.c.b16 %v362, %v360
        %v387 = vpack.c.b16 %v365, %v363
        %v388 = vpack.c.b16 %v366, %v364
        %v389 = vpack.c.b16 %v369, %v367
        %v390 = vpack.c.b16 %v370, %v368
        %v391 = vpack.c.b16 %v373, %v371
        %v392 = vpack.c.b16 %v374, %v372
        %v393 = vpack.c.b16 %v377, %v375
        %v394 = vpack.c.b16 %v378, %v376
        %v395 = vpack.c.b16 %v381, %v379
        %v396 = vpack.c.b16 %v382, %v380
        %vm409 = vcmask 883712
        %v411 = vsel %vm409, %v320, 0
        %vm413 = vcmask 1045504
        %v415 = vsel %vm413, %v395, 0
        %v418 = vsel %vm413, %v396, 0
        %420 = vmatprep.subr.bf16.mxu0 %v384
        %421 = vmatpush1.bf16.msra.mxu0 %v383
        %422 = vmatprep.subr.bf16.mxu0 %v386
        %423 = vmatpush1.bf16.msra.mxu0 %v385
        %424 = vmatprep.subr.bf16.mxu0 %v388
        %425 = vmatpush1.bf16.msra.mxu0 %v387
        %426 = vmatprep.subr.bf16.mxu0 %v390
        %427 = vmatpush1.bf16.msra.mxu0 %v389
        %428 = vmatprep.subr.bf16.mxu0 %v392
        %429 = vmatpush1.bf16.msra.mxu0 %v391
        %430 = vmatprep.subr.bf16.mxu0 %v394
        %431 = vmatpush1.bf16.msra.mxu0 %v393
        %432 = vmatprep.subr.bf16.mxu0 %v418
        %433 = vmatpush1.bf16.msra.mxu0 %v415
        %434 = vmatprep.subr.bf16.mxu0 0
        %435 = vmatpush1.bf16.msra.mxu0 0
        %436 = vmatprep.subr.bf16.mxu0 0
        %437 = vmatpush1.bf16.msra.mxu0 0
        %438 = vmatprep.subr.bf16.mxu0 0
        %439 = vmatpush1.bf16.msra.mxu0 0
        %440 = vmatprep.subr.bf16.mxu0 0
        %441 = vmatpush1.bf16.msra.mxu0 0
        %442 = vmatprep.subr.bf16.mxu0 0
        %443 = vmatpush1.bf16.msra.mxu0 0
        %444 = vmatprep.subr.bf16.mxu0 0
        %445 = vmatpush1.bf16.msra.mxu0 0
        %446 = vmatprep.subr.bf16.mxu0 0
        %447 = vmatpush1.bf16.msra.mxu0 0
        %448 = vmatprep.subr.bf16.mxu0 0
        %449 = vmatpush1.bf16.msra.mxu0 0
        %450 = vmatprep.subr.bf16.mxu0 0
        %451 = vmatpush1.bf16.msra.mxu0 0
        %452 = vmatprep.mubr.bf16.mxu0 0
        %453 = vmatmul.mubr.bf16.gmra.mrb[0].mxu0 %v411
        %v454 = vpop.f32.mrb[0].mxu0
        %v455 = vadd.f32 %v339, %v454
        %v456 = vpop.f32.mrb[0].mxu0
        %v457 = vadd.f32 %v339, %v456
        %v458 = vpop.f32.mrb[0].mxu0
        %v459 = vpop.f32.mrb[0].mxu0
        %460 = vdwg.mxu0
        %vm461 = vcmp.ge.f32.partialorder %v455, 0.0
        %vm462 = vcmp.ge.f32.partialorder %v457, 0.0
        %v463 = vmul.f32 %v455, 0.2
        %v464 = vmul.f32 %v457, 0.2
        %v465 = vsel %vm461, %v455, %v463
        %v466 = vsel %vm462, %v457, %v464
        %467 = vst [vmem:[%s308] sm:$0xff] %v465
        %468 = vst [vmem:[%s308 + $0x8] sm:$0xff] %v466
        %s469 = sand.u32 %s128, 1
        %s470 = scalar_lea.sflag [#allocation4], %s469
        %s471 = sand.u32 %s128, 1
        %s472 = smul.addr %s471, 16
        %s473 = scalar_lea.vmem [#allocation3], %s472
        // Predicated region
        $region71: #{tpu_custom_call.1} parent=65 // pred_check
          %p474 = pneg %p138
        $region72: #{tpu_custom_call.1} parent=65 // pred_check_branch
          %476 = sbr.rel (%p474) target = $region74
        $region73: #{tpu_custom_call.1} parent=65 // pred_region
          %s477 = smul.u32 2, %s24
          %s479 = ssub.s32 256, 256
          %480 = vsyncadd %s470, %s479
          %s481 = smul.addr %s23, 4
          %s482 = sadd.s32 %s477, %s481
          %s483 = smul.addr %s22, 4
          %s484 = sadd.s32 %s482, %s483
          %s485 = smul.addr %s484, 128
          %s486 = scalar_lea.hbm %s3, %s485
          %s488 = sshll.u32 %s473, 4
          %s489 = int_to_ptr.vmem [resolvable:$true] %s488
          %491 = dma.vmem_to_hbm [thread:$0]  %s489, 256, %s486, %s470
        $region74: #{tpu_custom_call.1} parent=65 // pred_fallthru
          _
      $region66: #{tpu_custom_call.1} parent=5 // pred_fallthru
        _
      %p492 = scmp.le.s32.totalorder 2, %s12
      // Predicated region
      $region75: #{tpu_custom_call.1} parent=5 // pred_check
        %p493 = pneg %p492
      $region76: #{tpu_custom_call.1} parent=5 // pred_check_branch
        %495 = sbr.rel (%p493) target = $region78
      $region77: #{tpu_custom_call.1} parent=5 // pred_region
        %s496 = ssub.s32 %s12, 2
        // Predicated region
        $region79: #{tpu_custom_call.1} parent=77 // pred_check
          %p497 = pneg %p144
        $region80: #{tpu_custom_call.1} parent=77 // pred_check_branch
          %499 = sbr.rel (%p497) target = $region82
        $region81: #{tpu_custom_call.1} parent=77 // pred_region
          %s500 = sand.u32 %s129, 1
          %s501 = scalar_lea.sflag [#allocation4], %s500
          %s502 = sand.u32 %s129, 1
          %s503 = smul.addr %s502, 16
          %s504 = scalar_lea.vmem [#allocation3], %s503
          %505 = dma.done %s501, 256
        $region82: #{tpu_custom_call.1} parent=77 // pred_fallthru
          _
      $region78: #{tpu_custom_call.1} parent=5 // pred_fallthru
        _
    $region6: #{tpu_custom_call.1} parent=1 // loop_footer
      %s16 = sadd.s32 1, %s12
    $region7: #{tpu_custom_call.1} parent=1 // loop_footer_branch
      %11 = sbr.rel target = $region3
    $region8: #{tpu_custom_call.1} parent=1 // loop_exit
      _
    %506 = vsyncpa [#allocation4], 1
    %s507 = scalar_lea.sflag [#allocation4], 1
    %508 = vsyncpa %s507, 1

</llo_original>
